<compile_context>
chip_gen: v7x
topology: tpu7x:2x2x1
jax: 0.10.0
libtpu: 0.0.40
codegen_flags: <defaults>
</compile_context>

<pallas_src>
import functools

import numpy as np
import jax
import jax.numpy as jnp
from jax import lax
from jax.experimental import pallas as pl
from jax.experimental.pallas import tpu as pltpu


# ------------------------------ Pallas kernel -------------------------------

def net_kernel(l1_ref, a1_ref, b1_ref, a2_ref, b2_ref,
               w1_ref, fb1_ref, w2_ref, fb2_ref, o_ref, *, t_b):
    # l1_ref : (1, 24*t_b, 140) pre-assembled conv1 banded im2col.
    #          row = group*(6*t_b) + i2*t_b + b, group=(s,ph); lane = kh*28 + wi
    #          holds image row 4*i2 + 2*s + ph + kh.
    # a1_ref : (140, 256) conv1 banded weights, cols = wj*128 + j*10 + co.
    # a2_ref : (640, 256) conv2 banded weights, rows = kh*128 + jin*10 + ci,
    #          cols = wj*128 + j*20 + co.
    # w1_ref : (512, 50) fc1, rows = h*128 + w*20 + c (pad rows zero).
    # o_ref  : (1, t_b, 10) log-softmax outputs.
    n6 = 6 * t_b
    n4 = 4 * t_b

    def pool_bias_relu(y, b_row):
        y = jnp.maximum(y[:, :128], y[:, 128:])    # width 2x1 max-pool, whole-vreg
        return jnp.maximum(y + b_row, 0.0)         # bias + ReLU (pad lanes stay 0)

    # -------- conv1 (1->10, k=5) + 2x2 max-pool + ReLU: one MXU matmul --------
    l1 = l1_ref[0]                                                       # (24*t_b, 140)
    y1 = jnp.dot(l1, a1_ref[...], preferred_element_type=jnp.float32)    # (24*t_b, 256)

    # height-pool = max over the two ph halves of each s group.
    y1h = (pool_bias_relu(jnp.maximum(y1[0 * n6:1 * n6], y1[1 * n6:2 * n6]), b1_ref[...]),
           pool_bias_relu(jnp.maximum(y1[2 * n6:3 * n6], y1[3 * n6:4 * n6]), b1_ref[...]))
    # y1h[s]: (6*t_b, 128); row i2*t_b + b = pooled conv1 row 2*i2+s of image b;
    # lane j*10 + co (lanes 120..127 exact zeros).

    # -------- conv2 (10->20, k=5) + 2x2 max-pool + ReLU: one MXU matmul -------
    def conv2_group(ph2):
        taps = []
        for kh in range(5):                         # static unroll, 5 taps
            t2 = ph2 + kh
            s, q = t2 % 2, t2 // 2
            taps.append(y1h[s][q * t_b:(q + 4) * t_b, :])    # (4*t_b, 128) contiguous
        return jnp.concatenate(taps, axis=1)                 # (4*t_b, 640), 128-aligned

    l2 = jnp.concatenate([conv2_group(0), conv2_group(1)], axis=0)       # (8*t_b, 640)
    y2 = jnp.dot(l2, a2_ref[...], preferred_element_type=jnp.float32)    # (8*t_b, 256)

    y2p = pool_bias_relu(jnp.maximum(y2[:n4], y2[n4:]), b2_ref[...])     # (4*t_b, 128)
    # row = h*t_b + b (h = pooled conv2 row); lane = w*20 + co (80..127 zero).

    # -------------- flatten + fc1 + ReLU + fc2 + log_softmax ------------------
    flat = jnp.concatenate([y2p[h * t_b:(h + 1) * t_b, :] for h in range(4)],
                           axis=1)                                       # (t_b, 512)

    h1 = jnp.dot(flat, w1_ref[...], preferred_element_type=jnp.float32) + fb1_ref[...]
    h1 = jnp.maximum(h1, 0.0)                                            # (t_b, 50)
    logits = jnp.dot(h1, w2_ref[...], preferred_element_type=jnp.float32) + fb2_ref[...]
    m = jnp.max(logits, axis=-1, keepdims=True)
    sh = logits - m
    o_ref[0] = sh - jnp.log(jnp.sum(jnp.exp(sh), axis=-1, keepdims=True))  # (t_b, 10)


# -------------------- host-side weight preprocessing -------------------------

def _prepare_weights(params):
    """Runs ONCE per model (host numpy); all layouts are 128-lane aligned."""
    (w1c, b1c, w2c, b2c, w1f, b1f, w2f, b2f) = (np.asarray(p, np.float32) for p in params)

    # conv1 banded matrix: rows = kh*28 + wi ; cols = wj*128 + j*10 + co
    a1 = np.zeros((5, 28, 256), np.float32)
    for kh in range(5):
        for kw in range(5):
            for wj in range(2):
                for j in range(12):
                    wi = 2 * j + wj + kw
                    c0 = wj * 128 + j * 10
                    a1[kh, wi, c0:c0 + 10] += w1c[:, 0, kh, kw]
    a1 = a1.reshape(140, 256)

    # conv2 banded matrix: rows = kh*128 + jin*10 + ci ; cols = wj*128 + j*20 + co
    a2 = np.zeros((5, 128, 256), np.float32)
    for kh in range(5):
        for kw in range(5):
            for wj in range(2):
                for j in range(4):
                    jin = 2 * j + wj + kw
                    c0 = wj * 128 + j * 20
                    a2[kh, jin * 10:jin * 10 + 10, c0:c0 + 20] += w2c[:, :, kh, kw].T
    a2 = a2.reshape(640, 256)

    # bias rows padded to 128 lanes (pad lanes MUST stay zero).
    b1row = np.zeros((1, 128), np.float32); b1row[0, :120] = np.tile(b1c, 12)
    b2row = np.zeros((1, 128), np.float32); b2row[0, :80] = np.tile(b2c, 4)

    # fc1: rows = h*128 + w*20 + c  <-  torch flatten index c*16 + h*4 + w.
    w1fp = np.zeros((512, 50), np.float32)
    for h in range(4):
        for w in range(4):
            for c in range(20):
                w1fp[h * 128 + w * 20 + c, :] = w1f[:, c * 16 + h * 4 + w]
    w2fp = w2f.T.copy()

    return tuple(jnp.asarray(a) for a in
                 (a1, b1row, a2, b2row, w1fp,
                  b1f.reshape(1, 50), w2fp, b2f.reshape(1, 10)))


# ------------------------------- JAX wrapper ---------------------------------

def _pick_block_b(B):
    if B <= 64:
        return B                                  # one grid step; VMEM stays tiny
    n_steps = 2 * (-(-B // 128))                  # even step count (v7x: 2 TCs)
    bb = -(-B // n_steps)
    return ((bb + 7) // 8) * 8                    # 8-row aligned sublane slices


def make_net_forward(params, block_b=None):
    """Prepare weights once; return a jitted forward(x) using one fused kernel."""
    prep = _prepare_weights(params)

    @jax.jit
    def forward(x):
        B = x.shape[0]
        bb = block_b if block_b is not None else _pick_block_b(B)
        grid_b = -(-B // bb)
        bp = grid_b * bb

        x2d = x[:, 0]                                             # (B, 28, 28)
        if bp != B:
            x2d = jnp.pad(x2d, ((0, bp - B), (0, 0), (0, 0)))

        # conv1 banded im2col, built with plain XLA ops (opt #4).
        # group (s, ph): tap kh holds image rows (2s+ph+kh) + 4*i2, i2 = 0..5.
        groups = []
        for s in (0, 1):
            for ph in (0, 1):
                taps = [x2d[:, (2 * s + ph + kh)::4, :][:, :6, :] for kh in range(5)]
                groups.append(jnp.concatenate(taps, axis=2))      # (bp, 6, 140)
        g = jnp.stack(groups, axis=0)                             # (4, bp, 6, 140)
        g = g.reshape(4, grid_b, bb, 6, 140).transpose(1, 0, 3, 2, 4)
        lhs1 = g.reshape(grid_b, 24 * bb, 140)                    # per-block LHS

        out = pl.pallas_call(
            functools.partial(net_kernel, t_b=bb),
            out_shape=jax.ShapeDtypeStruct((grid_b, bb, 10), jnp.float32),
            grid=(grid_b,),
            in_specs=[
                pl.BlockSpec((1, 24 * bb, 140), lambda i: (i, 0, 0)),  # conv1 LHS
                pl.BlockSpec((140, 256), lambda i: (0, 0)),            # conv1 banded W
                pl.BlockSpec((1, 128), lambda i: (0, 0)),              # conv1 bias row
                pl.BlockSpec((640, 256), lambda i: (0, 0)),            # conv2 banded W
                pl.BlockSpec((1, 128), lambda i: (0, 0)),              # conv2 bias row
                pl.BlockSpec((512, 50), lambda i: (0, 0)),             # fc1 W (padded K)
                pl.BlockSpec((1, 50), lambda i: (0, 0)),               # fc1 b
                pl.BlockSpec((50, 10), lambda i: (0, 0)),              # fc2 W
                pl.BlockSpec((1, 10), lambda i: (0, 0)),               # fc2 b
            ],
            out_specs=pl.BlockSpec((1, bb, 10), lambda i: (i, 0, 0)),
            compiler_params=pltpu.CompilerParams(
                dimension_semantics=("parallel",),
                vmem_limit_bytes=40 * 1024 * 1024),   # v5e's 16 MiB default is too low
        )(lhs1, *prep)
        return out.reshape(bp, 10)[:B]

    return forward


def reference_forward(x, params):
    """Pure-JAX reference reproducing the PyTorch forward (eval mode)."""
    (w1c, b1c, w2c, b2c, w1f, b1f, w2f, b2f) = params
    B = x.shape[0]
    y = lax.conv(x, w1c, (1, 1), 'VALID') + b1c[None, :, None, None]
    y = jnp.max(y.reshape(B, 10, 12, 2, 12, 2), axis=(3, 5))
    y = jnp.maximum(y, 0.0)
    y = lax.conv(y, w2c, (1, 1), 'VALID') + b2c[None, :, None, None]
    y = jnp.max(y.reshape(B, 20, 4, 2, 4, 2), axis=(3, 5))
    y = jnp.maximum(y, 0.0)
    y = y.reshape(B, 320)
    h = jnp.maximum(y @ w1f.T + b1f, 0.0)
    logits = h @ w2f.T + b2f
    return jax.nn.log_softmax(logits, axis=-1)


# ----------------------------------- main ------------------------------------

if __name__ == "__main__":
    key = jax.random.PRNGKey(0)
    ks = jax.random.split(key, 9)

    # Deterministic synthetic parameters (shapes from Net.__init__), PyTorch layouts.
    w1c = jax.random.normal(ks[0], (10, 1, 5, 5), jnp.float32) * 0.2   # conv1.weight
    b1c = jax.random.normal(ks[1], (10,), jnp.float32) * 0.1           # conv1.bias
    w2c = jax.random.normal(ks[2], (20, 10, 5, 5), jnp.float32) * 0.06 # conv2.weight
    b2c = jax.random.normal(ks[3], (20,), jnp.float32) * 0.1           # conv2.bias
    w1f = jax.random.normal(ks[4], (50, 320), jnp.float32) * 0.05      # fc1.weight
    b1f = jax.random.normal(ks[5], (50,), jnp.float32) * 0.1           # fc1.bias
    w2f = jax.random.normal(ks[6], (10, 50), jnp.float32) * 0.1        # fc2.weight
    b2f = jax.random.normal(ks[7], (10,), jnp.float32) * 0.1           # fc2.bias
    params = (w1c, b1c, w2c, b2c, w1f, b1f, w2f, b2f)

    # Input: batch=2 MNIST-shaped images (28x28 so view(-1, 320) is valid).
    x = jax.random.normal(ks[8], (2, 1, 28, 28), jnp.float32)

    net_forward = make_net_forward(params)         # weight prep hoisted / cached
    out = net_forward(x)
    out = jax.block_until_ready(out)

    ref = reference_forward(x, params)
    assert out.shape == (2, 10)
    assert jnp.allclose(out, ref, atol=1e-4, rtol=1e-4), (
        f"mismatch: max abs err {jnp.max(jnp.abs(out - ref))}")

    print("KERNEL_OK")
</pallas_src>

<mosaic_0001>
module attributes {stable_mosaic.version = 11 : i64} {
  func.func @net_kernel(%arg0: i32, %arg1: memref<1x48x140xf32, #tpu.memory_space<vmem>>, %arg2: memref<140x256xf32, #tpu.memory_space<vmem>>, %arg3: memref<1x128xf32, #tpu.memory_space<vmem>>, %arg4: memref<640x256xf32, #tpu.memory_space<vmem>>, %arg5: memref<1x128xf32, #tpu.memory_space<vmem>>, %arg6: memref<512x50xf32, #tpu.memory_space<vmem>>, %arg7: memref<1x50xf32, #tpu.memory_space<vmem>>, %arg8: memref<50x10xf32, #tpu.memory_space<vmem>>, %arg9: memref<1x10xf32, #tpu.memory_space<vmem>>, %arg10: memref<1x2x10xf32, #tpu.memory_space<vmem>>) attributes {dimension_semantics = [#tpu.dimension_semantics<parallel>], iteration_bounds = array<i64: 1>, scalar_prefetch = 0 : i64, scratch_operands = 0 : i64, tpu.core_type = #tpu.core_type<tc>, window_params = [{transform_indices = @transform_0, window_bounds = array<i64: 1, 48, 140>}, {pipeline_mode = #tpu.pipeline_mode<synchronous>, transform_indices = @transform_1, window_bounds = array<i64: 140, 256>}, {pipeline_mode = #tpu.pipeline_mode<synchronous>, transform_indices = @transform_2, window_bounds = array<i64: 1, 128>}, {pipeline_mode = #tpu.pipeline_mode<synchronous>, transform_indices = @transform_3, window_bounds = array<i64: 640, 256>}, {pipeline_mode = #tpu.pipeline_mode<synchronous>, transform_indices = @transform_4, window_bounds = array<i64: 1, 128>}, {pipeline_mode = #tpu.pipeline_mode<synchronous>, transform_indices = @transform_5, window_bounds = array<i64: 512, 50>}, {pipeline_mode = #tpu.pipeline_mode<synchronous>, transform_indices = @transform_6, window_bounds = array<i64: 1, 50>}, {pipeline_mode = #tpu.pipeline_mode<synchronous>, transform_indices = @transform_7, window_bounds = array<i64: 50, 10>}, {pipeline_mode = #tpu.pipeline_mode<synchronous>, transform_indices = @transform_8, window_bounds = array<i64: 1, 10>}, {transform_indices = @transform_9, window_bounds = array<i64: 1, 2, 10>}]} {
    %c0 = arith.constant 0 : index
    %c0_0 = arith.constant 0 : index
    %c0_1 = arith.constant 0 : index
    %0 = vector.load %arg1[%c0, %c0_0, %c0_1] : memref<1x48x140xf32, #tpu.memory_space<vmem>>, vector<1x48x140xf32>
    %1 = vector.shape_cast %0 : vector<1x48x140xf32> to vector<48x140xf32>
    %c0_2 = arith.constant 0 : index
    %c0_3 = arith.constant 0 : index
    %2 = vector.load %arg2[%c0_2, %c0_3] : memref<140x256xf32, #tpu.memory_space<vmem>>, vector<140x256xf32>
    %cst = arith.constant dense<0.000000e+00> : vector<48x256xf32>
    %3 = tpu.matmul %1, %2, %cst {dimension_numbers = #tpu.dot_dimension_numbers<[1], [0], [0], [1], [0, 0, 1, 1], [], []>} : vector<48x140xf32>, vector<140x256xf32>, vector<48x256xf32> -> vector<48x256xf32>
    %4 = vector.extract_strided_slice %3 {offsets = [0, 0], sizes = [12, 256], strides = [1, 1]} : vector<48x256xf32> to vector<12x256xf32>
    %5 = vector.extract_strided_slice %3 {offsets = [12, 0], sizes = [12, 256], strides = [1, 1]} : vector<48x256xf32> to vector<12x256xf32>
    %6 = arith.maximumf %4, %5 : vector<12x256xf32>
    %c0_4 = arith.constant 0 : index
    %c0_5 = arith.constant 0 : index
    %7 = vector.load %arg3[%c0_4, %c0_5] : memref<1x128xf32, #tpu.memory_space<vmem>>, vector<1x128xf32>
    %8 = vector.extract_strided_slice %6 {offsets = [0, 0], sizes = [12, 128], strides = [1, 1]} : vector<12x256xf32> to vector<12x128xf32>
    %9 = vector.extract_strided_slice %6 {offsets = [0, 128], sizes = [12, 128], strides = [1, 1]} : vector<12x256xf32> to vector<12x128xf32>
    %10 = arith.maximumf %8, %9 : vector<12x128xf32>
    %11 = vector.broadcast %7 : vector<1x128xf32> to vector<12x128xf32>
    %12 = arith.addf %10, %11 : vector<12x128xf32>
    %cst_6 = arith.constant 0.000000e+00 : f32
    %13 = vector.broadcast %cst_6 : f32 to vector<12x128xf32>
    %14 = arith.maximumf %12, %13 : vector<12x128xf32>
    %15 = vector.extract_strided_slice %3 {offsets = [24, 0], sizes = [12, 256], strides = [1, 1]} : vector<48x256xf32> to vector<12x256xf32>
    %16 = vector.extract_strided_slice %3 {offsets = [36, 0], sizes = [12, 256], strides = [1, 1]} : vector<48x256xf32> to vector<12x256xf32>
    %17 = arith.maximumf %15, %16 : vector<12x256xf32>
    %c0_7 = arith.constant 0 : index
    %c0_8 = arith.constant 0 : index
    %18 = vector.load %arg3[%c0_7, %c0_8] : memref<1x128xf32, #tpu.memory_space<vmem>>, vector<1x128xf32>
    %19 = vector.extract_strided_slice %17 {offsets = [0, 0], sizes = [12, 128], strides = [1, 1]} : vector<12x256xf32> to vector<12x128xf32>
    %20 = vector.extract_strided_slice %17 {offsets = [0, 128], sizes = [12, 128], strides = [1, 1]} : vector<12x256xf32> to vector<12x128xf32>
    %21 = arith.maximumf %19, %20 : vector<12x128xf32>
    %22 = vector.broadcast %18 : vector<1x128xf32> to vector<12x128xf32>
    %23 = arith.addf %21, %22 : vector<12x128xf32>
    %cst_9 = arith.constant 0.000000e+00 : f32
    %24 = vector.broadcast %cst_9 : f32 to vector<12x128xf32>
    %25 = arith.maximumf %23, %24 : vector<12x128xf32>
    %26 = vector.extract_strided_slice %14 {offsets = [0, 0], sizes = [8, 128], strides = [1, 1]} : vector<12x128xf32> to vector<8x128xf32>
    %27 = vector.extract_strided_slice %25 {offsets = [0, 0], sizes = [8, 128], strides = [1, 1]} : vector<12x128xf32> to vector<8x128xf32>
    %28 = vector.extract_strided_slice %14 {offsets = [2, 0], sizes = [8, 128], strides = [1, 1]} : vector<12x128xf32> to vector<8x128xf32>
    %29 = vector.extract_strided_slice %25 {offsets = [2, 0], sizes = [8, 128], strides = [1, 1]} : vector<12x128xf32> to vector<8x128xf32>
    %30 = vector.extract_strided_slice %14 {offsets = [4, 0], sizes = [8, 128], strides = [1, 1]} : vector<12x128xf32> to vector<8x128xf32>
    %31 = tpu.concatenate %26, %27, %28, %29, %30 in 1 : vector<8x128xf32>, vector<8x128xf32>, vector<8x128xf32>, vector<8x128xf32>, vector<8x128xf32> -> vector<8x640xf32>
    %32 = vector.extract_strided_slice %25 {offsets = [0, 0], sizes = [8, 128], strides = [1, 1]} : vector<12x128xf32> to vector<8x128xf32>
    %33 = vector.extract_strided_slice %14 {offsets = [2, 0], sizes = [8, 128], strides = [1, 1]} : vector<12x128xf32> to vector<8x128xf32>
    %34 = vector.extract_strided_slice %25 {offsets = [2, 0], sizes = [8, 128], strides = [1, 1]} : vector<12x128xf32> to vector<8x128xf32>
    %35 = vector.extract_strided_slice %14 {offsets = [4, 0], sizes = [8, 128], strides = [1, 1]} : vector<12x128xf32> to vector<8x128xf32>
    %36 = vector.extract_strided_slice %25 {offsets = [4, 0], sizes = [8, 128], strides = [1, 1]} : vector<12x128xf32> to vector<8x128xf32>
    %37 = tpu.concatenate %32, %33, %34, %35, %36 in 1 : vector<8x128xf32>, vector<8x128xf32>, vector<8x128xf32>, vector<8x128xf32>, vector<8x128xf32> -> vector<8x640xf32>
    %38 = tpu.concatenate %31, %37 in 0 : vector<8x640xf32>, vector<8x640xf32> -> vector<16x640xf32>
    %c0_10 = arith.constant 0 : index
    %c0_11 = arith.constant 0 : index
    %39 = vector.load %arg4[%c0_10, %c0_11] : memref<640x256xf32, #tpu.memory_space<vmem>>, vector<640x256xf32>
    %cst_12 = arith.constant dense<0.000000e+00> : vector<16x256xf32>
    %40 = tpu.matmul %38, %39, %cst_12 {dimension_numbers = #tpu.dot_dimension_numbers<[1], [0], [0], [1], [0, 0, 1, 1], [], []>} : vector<16x640xf32>, vector<640x256xf32>, vector<16x256xf32> -> vector<16x256xf32>
    %41 = vector.extract_strided_slice %40 {offsets = [0, 0], sizes = [8, 256], strides = [1, 1]} : vector<16x256xf32> to vector<8x256xf32>
    %42 = vector.extract_strided_slice %40 {offsets = [8, 0], sizes = [8, 256], strides = [1, 1]} : vector<16x256xf32> to vector<8x256xf32>
    %43 = arith.maximumf %41, %42 : vector<8x256xf32>
    %c0_13 = arith.constant 0 : index
    %c0_14 = arith.constant 0 : index
    %44 = vector.load %arg5[%c0_13, %c0_14] : memref<1x128xf32, #tpu.memory_space<vmem>>, vector<1x128xf32>
    %45 = vector.extract_strided_slice %43 {offsets = [0, 0], sizes = [8, 128], strides = [1, 1]} : vector<8x256xf32> to vector<8x128xf32>
    %46 = vector.extract_strided_slice %43 {offsets = [0, 128], sizes = [8, 128], strides = [1, 1]} : vector<8x256xf32> to vector<8x128xf32>
    %47 = arith.maximumf %45, %46 : vector<8x128xf32>
    %48 = vector.broadcast %44 : vector<1x128xf32> to vector<8x128xf32>
    %49 = arith.addf %47, %48 : vector<8x128xf32>
    %cst_15 = arith.constant 0.000000e+00 : f32
    %50 = vector.broadcast %cst_15 : f32 to vector<8x128xf32>
    %51 = arith.maximumf %49, %50 : vector<8x128xf32>
    %52 = vector.extract_strided_slice %51 {offsets = [0, 0], sizes = [2, 128], strides = [1, 1]} : vector<8x128xf32> to vector<2x128xf32>
    %53 = vector.extract_strided_slice %51 {offsets = [2, 0], sizes = [2, 128], strides = [1, 1]} : vector<8x128xf32> to vector<2x128xf32>
    %54 = vector.extract_strided_slice %51 {offsets = [4, 0], sizes = [2, 128], strides = [1, 1]} : vector<8x128xf32> to vector<2x128xf32>
    %55 = vector.extract_strided_slice %51 {offsets = [6, 0], sizes = [2, 128], strides = [1, 1]} : vector<8x128xf32> to vector<2x128xf32>
    %56 = tpu.concatenate %52, %53, %54, %55 in 1 : vector<2x128xf32>, vector<2x128xf32>, vector<2x128xf32>, vector<2x128xf32> -> vector<2x512xf32>
    %c0_16 = arith.constant 0 : index
    %c0_17 = arith.constant 0 : index
    %57 = vector.load %arg6[%c0_16, %c0_17] : memref<512x50xf32, #tpu.memory_space<vmem>>, vector<512x50xf32>
    %cst_18 = arith.constant dense<0.000000e+00> : vector<2x50xf32>
    %58 = tpu.matmul %56, %57, %cst_18 {dimension_numbers = #tpu.dot_dimension_numbers<[1], [0], [0], [1], [0, 0, 1, 1], [], []>} : vector<2x512xf32>, vector<512x50xf32>, vector<2x50xf32> -> vector<2x50xf32>
    %c0_19 = arith.constant 0 : index
    %c0_20 = arith.constant 0 : index
    %59 = vector.load %arg7[%c0_19, %c0_20] : memref<1x50xf32, #tpu.memory_space<vmem>>, vector<1x50xf32>
    %60 = vector.broadcast %59 : vector<1x50xf32> to vector<2x50xf32>
    %61 = arith.addf %58, %60 : vector<2x50xf32>
    %cst_21 = arith.constant 0.000000e+00 : f32
    %62 = vector.broadcast %cst_21 : f32 to vector<2x50xf32>
    %63 = arith.maximumf %61, %62 : vector<2x50xf32>
    %c0_22 = arith.constant 0 : index
    %c0_23 = arith.constant 0 : index
    %64 = vector.load %arg8[%c0_22, %c0_23] : memref<50x10xf32, #tpu.memory_space<vmem>>, vector<50x10xf32>
    %cst_24 = arith.constant dense<0.000000e+00> : vector<2x10xf32>
    %65 = tpu.matmul %63, %64, %cst_24 {dimension_numbers = #tpu.dot_dimension_numbers<[1], [0], [0], [1], [0, 0, 1, 1], [], []>} : vector<2x50xf32>, vector<50x10xf32>, vector<2x10xf32> -> vector<2x10xf32>
    %c0_25 = arith.constant 0 : index
    %c0_26 = arith.constant 0 : index
    %66 = vector.load %arg9[%c0_25, %c0_26] : memref<1x10xf32, #tpu.memory_space<vmem>>, vector<1x10xf32>
    %67 = vector.broadcast %66 : vector<1x10xf32> to vector<2x10xf32>
    %68 = arith.addf %65, %67 : vector<2x10xf32>
    %cst_27 = arith.constant dense<0xFF800000> : vector<2xf32>
    %69 = vector.multi_reduction <maximumf>, %68, %cst_27 [1] : vector<2x10xf32> to vector<2xf32>
    %70 = vector.shape_cast %69 : vector<2xf32> to vector<2x1xf32>
    %71 = vector.broadcast %70 : vector<2x1xf32> to vector<2x10xf32>
    %72 = arith.subf %68, %71 : vector<2x10xf32>
    %73 = math.exp %72 : vector<2x10xf32>
    %cst_28 = arith.constant dense<0.000000e+00> : vector<2xf32>
    %74 = vector.multi_reduction <add>, %73, %cst_28 [1] : vector<2x10xf32> to vector<2xf32>
    %75 = vector.shape_cast %74 : vector<2xf32> to vector<2x1xf32>
    %76 = math.log %75 : vector<2x1xf32>
    %77 = vector.broadcast %76 : vector<2x1xf32> to vector<2x10xf32>
    %78 = arith.subf %72, %77 : vector<2x10xf32>
    %c0_29 = arith.constant 0 : index
    %c0_30 = arith.constant 0 : index
    %c0_31 = arith.constant 0 : index
    %79 = vector.load %arg10[%c0_29, %c0_30, %c0_31] : memref<1x2x10xf32, #tpu.memory_space<vmem>>, vector<1x2x10xf32>
    %80 = vector.shape_cast %79 : vector<1x2x10xf32> to vector<2x10xf32>
    %81 = vector.shape_cast %78 : vector<2x10xf32> to vector<1x2x10xf32>
    tpu.vector_store %arg10[%c0_29, %c0_30, %c0_31], %81 {strides = array<i32>} : memref<1x2x10xf32, #tpu.memory_space<vmem>>, vector<1x2x10xf32>,
    return
  }
  func.func @transform_0(%arg0: i32) -> (i32, i32, i32) {
    %c0_i32 = arith.constant 0 : i32
    %c0_i32_0 = arith.constant 0 : i32
    %c0_i32_1 = arith.constant 0 : i32
    return %arg0, %c0_i32, %c0_i32_0 : i32, i32, i32
  }
  func.func @transform_1(%arg0: i32) -> (i32, i32) {
    %c0_i32 = arith.constant 0 : i32
    %c0_i32_0 = arith.constant 0 : i32
    %c0_i32_1 = arith.constant 0 : i32
    return %c0_i32, %c0_i32_0 : i32, i32
  }
  func.func @transform_2(%arg0: i32) -> (i32, i32) {
    %c0_i32 = arith.constant 0 : i32
    %c0_i32_0 = arith.constant 0 : i32
    %c0_i32_1 = arith.constant 0 : i32
    return %c0_i32, %c0_i32_0 : i32, i32
  }
  func.func @transform_3(%arg0: i32) -> (i32, i32) {
    %c0_i32 = arith.constant 0 : i32
    %c0_i32_0 = arith.constant 0 : i32
    %c0_i32_1 = arith.constant 0 : i32
    return %c0_i32, %c0_i32_0 : i32, i32
  }
  func.func @transform_4(%arg0: i32) -> (i32, i32) {
    %c0_i32 = arith.constant 0 : i32
    %c0_i32_0 = arith.constant 0 : i32
    %c0_i32_1 = arith.constant 0 : i32
    return %c0_i32, %c0_i32_0 : i32, i32
  }
  func.func @transform_5(%arg0: i32) -> (i32, i32) {
    %c0_i32 = arith.constant 0 : i32
    %c0_i32_0 = arith.constant 0 : i32
    %c0_i32_1 = arith.constant 0 : i32
    return %c0_i32, %c0_i32_0 : i32, i32
  }
  func.func @transform_6(%arg0: i32) -> (i32, i32) {
    %c0_i32 = arith.constant 0 : i32
    %c0_i32_0 = arith.constant 0 : i32
    %c0_i32_1 = arith.constant 0 : i32
    return %c0_i32, %c0_i32_0 : i32, i32
  }
  func.func @transform_7(%arg0: i32) -> (i32, i32) {
    %c0_i32 = arith.constant 0 : i32
    %c0_i32_0 = arith.constant 0 : i32
    %c0_i32_1 = arith.constant 0 : i32
    return %c0_i32, %c0_i32_0 : i32, i32
  }
  func.func @transform_8(%arg0: i32) -> (i32, i32) {
    %c0_i32 = arith.constant 0 : i32
    %c0_i32_0 = arith.constant 0 : i32
    %c0_i32_1 = arith.constant 0 : i32
    return %c0_i32, %c0_i32_0 : i32, i32
  }
  func.func @transform_9(%arg0: i32) -> (i32, i32, i32) {
    %c0_i32 = arith.constant 0 : i32
    %c0_i32_0 = arith.constant 0 : i32
    %c0_i32_1 = arith.constant 0 : i32
    return %arg0, %c0_i32, %c0_i32_0 : i32, i32, i32
  }
}

</mosaic_0001>

<llo_original>
// kernel: forward.1
$region0: #{forward.1}
  #allocation0 [shape = 'u32[]', space=smem, size = 0x4, offset = 0x4, fixed_abs, tag = 'smem constant byte address 0x4 - core index']
  #allocation1 [shape = 'u32[144,128]{1,0:T(1,128)}', space=vmem, size = 0x12000, scoped, tag = 'internal scratch']
  %s0 = inlined_call_operand.vmem [shape: f32[1,48,140], index: 0, kind: input, shape index: {}]
  %s1 = inlined_call_operand.vmem [shape: f32[140,256], index: 1, kind: input, shape index: {}]
  %s2 = inlined_call_operand.vmem [shape: f32[1,128], index: 2, kind: input, shape index: {}]
  %s3 = inlined_call_operand.hbm [shape: f32[640,256], index: 3, kind: input, shape index: {}]
  %s4 = inlined_call_operand.vmem [shape: f32[1,128], index: 4, kind: input, shape index: {}]
  %s5 = inlined_call_operand.vmem [shape: f32[512,50], index: 5, kind: input, shape index: {}]
  %s6 = inlined_call_operand.vmem [shape: f32[1,50], index: 6, kind: input, shape index: {}]
  %s7 = inlined_call_operand.vmem [shape: f32[50,10], index: 7, kind: input, shape index: {}]
  %s8 = inlined_call_operand.vmem [shape: f32[1,10], index: 8, kind: input, shape index: {}]
  %s9 = inlined_call_operand.hbm [shape: f32[1,2,10], index: 9, kind: output, shape index: {}]
  %s10 = sld [smem:[#allocation0]]
  $region50: #{forward.1} parent=0
    _
  %s12 = ssub.s32 1, %s10
  %s13 = scalar_select 0, %s12, %s10
  $region1: #{forward.1} parent=0
    #allocation2 [shape = 'u8[655360]{0}', space=vmem, size = 0xa0000, scoped, tag = 'input window, operand 3, single buffered']
    #allocation3 [shape = 's32[1]{0}', space=sflag, size = 0x4, scoped, tag = 'scoped memory for forward.1']
    #allocation4 [shape = 's32[1]{0}', space=sflag, size = 0x4, scoped, tag = 'scoped memory for forward.1']
    #allocation5 [shape = 'u8[1024]{0}', space=vmem, size = 0x400, scoped, tag = 'output window, operand 0, single buffered']
    %14 = vsyncpa [#allocation3], 0
    %15 = vsyncpa [#allocation4], 0
    // Predicated region
    $region2: #{forward.1} parent=1 // pred_check
      _
    $region3: #{forward.1} parent=1 // pred_check_branch
      %17 = sbr.rel (0) target = $region5
    $region4: #{forward.1} parent=1 // pred_region
      _
    $region5: #{forward.1} parent=1 // pred_fallthru
      _
    // Predicated region
    $region6: #{forward.1} parent=1 // pred_check
      _
    $region7: #{forward.1} parent=1 // pred_check_branch
      %19 = sbr.rel (0) target = $region9
    $region8: #{forward.1} parent=1 // pred_region
      _
    $region9: #{forward.1} parent=1 // pred_fallthru
      _
    // Predicated region
    $region10: #{forward.1} parent=1 // pred_check
      _
    $region11: #{forward.1} parent=1 // pred_check_branch
      %21 = sbr.rel (0) target = $region13
    $region12: #{forward.1} parent=1 // pred_region
      _
    $region13: #{forward.1} parent=1 // pred_fallthru
      _
    // Predicated region
    $region14: #{forward.1} parent=1 // pred_check
      _
    $region15: #{forward.1} parent=1 // pred_check_branch
      %23 = sbr.rel (0) target = $region17
    $region16: #{forward.1} parent=1 // pred_region
      %s25 = ssub.s32 20480, 20480
      %26 = vsyncadd [#allocation3], %s25
      %s27 = sshll.u32 [#allocation2], 4
      %s28 = int_to_ptr.vmem [resolvable:$true] %s27
      %33 = dma.hbm_to_vmem [thread:$0]  %s3, 20480, %s28, [#allocation3], 256, 256, 16
    $region17: #{forward.1} parent=1 // pred_fallthru
      _
    // Predicated region
    $region18: #{forward.1} parent=1 // pred_check
      _
    $region19: #{forward.1} parent=1 // pred_check_branch
      %35 = sbr.rel (0) target = $region21
    $region20: #{forward.1} parent=1 // pred_region
      _
    $region21: #{forward.1} parent=1 // pred_fallthru
      _
    // Predicated region
    $region22: #{forward.1} parent=1 // pred_check
      _
    $region23: #{forward.1} parent=1 // pred_check_branch
      %37 = sbr.rel (0) target = $region25
    $region24: #{forward.1} parent=1 // pred_region
      _
    $region25: #{forward.1} parent=1 // pred_fallthru
      _
    // Predicated region
    $region26: #{forward.1} parent=1 // pred_check
      _
    $region27: #{forward.1} parent=1 // pred_check_branch
      %39 = sbr.rel (0) target = $region29
    $region28: #{forward.1} parent=1 // pred_region
      _
    $region29: #{forward.1} parent=1 // pred_fallthru
      _
    // Predicated region
    $region30: #{forward.1} parent=1 // pred_check
      _
    $region31: #{forward.1} parent=1 // pred_check_branch
      %41 = sbr.rel (0) target = $region33
    $region32: #{forward.1} parent=1 // pred_region
      _
    $region33: #{forward.1} parent=1 // pred_fallthru
      _
    // Predicated region
    $region34: #{forward.1} parent=1 // pred_check
      _
    $region35: #{forward.1} parent=1 // pred_check_branch
      %43 = sbr.rel (0) target = $region37
    $region36: #{forward.1} parent=1 // pred_region
      _
    $region37: #{forward.1} parent=1 // pred_fallthru
      _
    // Predicated region
    $region38: #{forward.1} parent=1 // pred_check
      _
    $region39: #{forward.1} parent=1 // pred_check_branch
      %45 = sbr.rel (0) target = $region41
    $region40: #{forward.1} parent=1 // pred_region
      %46 = dma.done [#allocation3], 20480
    $region41: #{forward.1} parent=1 // pred_fallthru
      _
    %v47 = vld [vmem:[%s0] sm:$0xff]
    %v48 = vld [vmem:[%s0 + $0x8] sm:$0xff]
    %v49 = vld [vmem:[%s0 + $0x10] sm:$0xff]
    %v50 = vld [vmem:[%s0 + $0x18] sm:$0xff]
    %v51 = vld [vmem:[%s0 + $0x20] sm:$0xff]
    %v52 = vld [vmem:[%s0 + $0x28] sm:$0xff]
    %v53 = vld [vmem:[%s0 + $0x30] sm:$0xff]
    %v54 = vld [vmem:[%s0 + $0x38] sm:$0xff]
    %v55 = vld [vmem:[%s0 + $0x40] sm:$0xff]
    %v56 = vld [vmem:[%s0 + $0x48] sm:$0xff]
    %v57 = vld [vmem:[%s0 + $0x50] sm:$0xff]
    %v58 = vld [vmem:[%s0 + $0x58] sm:$0xff]
    %v59 = vld [vmem:[%s1] sm:$0xff]
    %v60 = vld [vmem:[%s1 + $0x8] sm:$0xff]
    %v61 = vld [vmem:[%s1 + $0x10] sm:$0xff]
    %v62 = vld [vmem:[%s1 + $0x18] sm:$0xff]
    %v63 = vld [vmem:[%s1 + $0x20] sm:$0xff]
    %v64 = vld [vmem:[%s1 + $0x28] sm:$0xff]
    %v65 = vld [vmem:[%s1 + $0x30] sm:$0xff]
    %v66 = vld [vmem:[%s1 + $0x38] sm:$0xff]
    %v67 = vld [vmem:[%s1 + $0x40] sm:$0xff]
    %v68 = vld [vmem:[%s1 + $0x48] sm:$0xff]
    %v69 = vld [vmem:[%s1 + $0x50] sm:$0xff]
    %v70 = vld [vmem:[%s1 + $0x58] sm:$0xff]
    %v71 = vld [vmem:[%s1 + $0x60] sm:$0xff]
    %v72 = vld [vmem:[%s1 + $0x68] sm:$0xff]
    %v73 = vld [vmem:[%s1 + $0x70] sm:$0xff]
    %v74 = vld [vmem:[%s1 + $0x78] sm:$0xff]
    %v75 = vld [vmem:[%s1 + $0x80] sm:$0xff]
    %v76 = vld [vmem:[%s1 + $0x88] sm:$0xff]
    %v77 = vld [vmem:[%s1 + $0x90] sm:$0xff]
    %v78 = vld [vmem:[%s1 + $0x98] sm:$0xff]
    %v79 = vld [vmem:[%s1 + $0xa0] sm:$0xff]
    %v80 = vld [vmem:[%s1 + $0xa8] sm:$0xff]
    %v81 = vld [vmem:[%s1 + $0xb0] sm:$0xff]
    %v82 = vld [vmem:[%s1 + $0xb8] sm:$0xff]
    %v83 = vld [vmem:[%s1 + $0xc0] sm:$0xff]
    %v84 = vld [vmem:[%s1 + $0xc8] sm:$0xff]
    %v85 = vld [vmem:[%s1 + $0xd0] sm:$0xff]
    %v86 = vld [vmem:[%s1 + $0xd8] sm:$0xff]
    %v87 = vld [vmem:[%s1 + $0xe0] sm:$0xff]
    %v88 = vld [vmem:[%s1 + $0xe8] sm:$0xff]
    %v89 = vld [vmem:[%s1 + $0xf0] sm:$0xff]
    %v90 = vld [vmem:[%s1 + $0xf8] sm:$0xff]
    %v91 = vld [vmem:[%s1 + $0x100] sm:$0xff]
    %v92 = vld [vmem:[%s1 + $0x108] sm:$0xff]
    %v93 = vld [vmem:[%s1 + $0x110] sm:$0xf]
    %v94 = vld [vmem:[%s1 + $0x118] sm:$0xf]
    %vm95 = vcmask 97280
    %v97 = vsel %vm95, %v48, 0
    %v100 = vsel %vm95, %v50, 0
    %v103 = vsel %vm95, %v52, 0
    %v106 = vsel %vm95, %v54, 0
    %v109 = vsel %vm95, %v56, 0
    %v112 = vsel %vm95, %v58, 0
    %vm114 = vcmask 1043456
    %v116 = vsel %vm114, %v93, 0
    %v119 = vsel %vm114, %v94, 0
    %121 = vmatprep.subr.mxu0 %v60
    %122 = vmatpush1.msra.mxu0 %v59
    %123 = vmatprep.subr.mxu0 %v62
    %124 = vmatpush1.msra.mxu0 %v61
    %125 = vmatprep.subr.mxu0 %v64
    %126 = vmatpush1.msra.mxu0 %v63
    %127 = vmatprep.subr.mxu0 %v66
    %128 = vmatpush1.msra.mxu0 %v65
    %129 = vmatprep.subr.mxu0 %v68
    %130 = vmatpush1.msra.mxu0 %v67
    %131 = vmatprep.subr.mxu0 %v70
    %132 = vmatpush1.msra.mxu0 %v69
    %133 = vmatprep.subr.mxu0 %v72
    %134 = vmatpush1.msra.mxu0 %v71
    %135 = vmatprep.subr.mxu0 %v74
    %136 = vmatpush1.msra.mxu0 %v73
    %137 = vmatprep.subr.mxu0 %v76
    %138 = vmatpush1.msra.mxu0 %v75
    %139 = vmatprep.subr.mxu0 %v78
    %140 = vmatpush1.msra.mxu0 %v77
    %141 = vmatprep.subr.mxu0 %v80
    %142 = vmatpush1.msra.mxu0 %v79
    %143 = vmatprep.subr.mxu0 %v82
    %144 = vmatpush1.msra.mxu0 %v81
    %145 = vmatprep.subr.mxu0 %v84
    %146 = vmatpush1.msra.mxu0 %v83
    %147 = vmatprep.subr.mxu0 %v86
    %148 = vmatpush1.msra.mxu0 %v85
    %149 = vmatprep.subr.mxu0 %v88
    %150 = vmatpush1.msra.mxu0 %v87
    %151 = vmatprep.subr.mxu0 %v90
    %152 = vmatpush1.msra.mxu0 %v89
    %153 = vmatprep.subr.mxu0 %v92
    %154 = vmatpush1.msra.mxu0 %v91
    %155 = vmatprep.subr.mxu0 %v119
    %156 = vmatpush1.msra.mxu0 %v116
    %157 = vmatprep.subr.mxu0 0.0
    %158 = vmatpush1.msra.mxu0 0.0
    %159 = vmatprep.subr.mxu0 0.0
    %160 = vmatpush1.msra.mxu0 0.0
    %161 = vmatprep.subr.mxu0 0.0
    %162 = vmatpush1.msra.mxu0 0.0
    %163 = vmatprep.subr.mxu0 0.0
    %164 = vmatpush1.msra.mxu0 0.0
    %165 = vmatprep.subr.mxu0 0.0
    %166 = vmatpush1.msra.mxu0 0.0
    %167 = vmatprep.subr.mxu0 0.0
    %168 = vmatpush1.msra.mxu0 0.0
    %169 = vmatprep.subr.mxu0 0.0
    %170 = vmatpush1.msra.mxu0 0.0
    %171 = vmatprep.subr.mxu0 0.0
    %172 = vmatpush1.msra.mxu0 0.0
    %173 = vmatprep.subr.mxu0 0.0
    %174 = vmatpush1.msra.mxu0 0.0
    %175 = vmatprep.subr.mxu0 0.0
    %176 = vmatpush1.msra.mxu0 0.0
    %177 = vmatprep.subr.mxu0 0.0
    %178 = vmatpush1.msra.mxu0 0.0
    %179 = vmatprep.subr.mxu0 0.0
    %180 = vmatpush1.msra.mxu0 0.0
    %181 = vmatprep.subr.mxu0 0.0
    %182 = vmatpush1.msra.mxu0 0.0
    %183 = vmatprep.subr.mxu0 0.0
    %184 = vmatpush1.msra.mxu0 0.0
    %185 = vmatprep.mubr.f32.mxu0 %v97
    %186 = vmatmul.mubr.f32.gmra.mrb[0].mxu0 %v47
    %v187 = vpop.f32.mrb[0].mxu0
    %v188 = vadd.f32 0.0, %v187
    %v189 = vpop.f32.mrb[0].mxu0
    %v190 = vadd.f32 0.0, %v189
    %191 = vmatprep.mubr.f32.mxu0 %v100
    %192 = vmatmul.mubr.f32.gmra.mrb[0].mxu0 %v49
    %v193 = vpop.f32.mrb[0].mxu0
    %v194 = vadd.f32 0.0, %v193
    %v195 = vpop.f32.mrb[0].mxu0
    %v196 = vadd.f32 0.0, %v195
    %197 = vmatprep.mubr.f32.mxu0 %v103
    %198 = vmatmul.mubr.f32.gmra.mrb[0].mxu0 %v51
    %v199 = vpop.f32.mrb[0].mxu0
    %v200 = vadd.f32 0.0, %v199
    %v201 = vpop.f32.mrb[0].mxu0
    %v202 = vadd.f32 0.0, %v201
    %203 = vmatprep.mubr.f32.mxu0 %v106
    %204 = vmatmul.mubr.f32.gmra.mrb[0].mxu0 %v53
    %v205 = vpop.f32.mrb[0].mxu0
    %v206 = vadd.f32 0.0, %v205
    %v207 = vpop.f32.mrb[0].mxu0
    %v208 = vadd.f32 0.0, %v207
    %209 = vmatprep.mubr.f32.mxu0 %v109
    %210 = vmatmul.mubr.f32.gmra.mrb[0].mxu0 %v55
    %v211 = vpop.f32.mrb[0].mxu0
    %v212 = vadd.f32 0.0, %v211
    %v213 = vpop.f32.mrb[0].mxu0
    %v214 = vadd.f32 0.0, %v213
    %215 = vmatprep.mubr.f32.mxu0 %v112
    %216 = vmatmul.mubr.f32.gmra.mrb[0].mxu0 %v57
    %v217 = vpop.f32.mrb[0].mxu0
    %v218 = vadd.f32 0.0, %v217
    %v219 = vpop.f32.mrb[0].mxu0
    %v220 = vadd.f32 0.0, %v219
    %221 = vdwg.mxu0
    %v226 = vrot.slane %v194, 4
    %v227 = vrot.slane %v200, 4
    %v228 = vsel %vm114, %v226, %v227
    %v229 = vrot.slane %v196, 4
    %v230 = vrot.slane %v202, 4
    %v231 = vsel %vm114, %v229, %v230
    %v236 = vmax.f32 %v188, %v228
    %v237 = vmax.f32 %v190, %v231
    %v238 = vmax.f32 %v194, %v227
    %v239 = vmax.f32 %v196, %v230
    %v240 = vld [vmem:[%s2] sm:$0x1]
    %v241 = vmax.f32 %v236, %v237
    %v242 = vmax.f32 %v238, %v239
    %v244 = vlaneseq
    %v245 = vshrl.u32 %v244, 7
    %v246 = vsub.s32 0, %v245
    %v247 = vrot.slane %v240, %v246
    %v249 = vadd.f32 %v241, %v247
    %v250 = vadd.f32 %v242, %v247
    %v251 = vmax.f32 %v249, 0.0
    %v252 = vmax.f32 %v250, 0.0
    %v257 = vrot.slane %v212, 4
    %v258 = vrot.slane %v218, 4
    %v259 = vsel %vm114, %v257, %v258
    %v260 = vrot.slane %v214, 4
    %v261 = vrot.slane %v220, 4
    %v262 = vsel %vm114, %v260, %v261
    %v267 = vmax.f32 %v206, %v259
    %v268 = vmax.f32 %v208, %v262
    %v269 = vmax.f32 %v212, %v258
    %v270 = vmax.f32 %v214, %v261
    %v271 = vmax.f32 %v267, %v268
    %v272 = vmax.f32 %v269, %v270
    %v273 = vadd.f32 %v271, %v247
    %v274 = vadd.f32 %v272, %v247
    %v275 = vmax.f32 %v273, 0.0
    %v276 = vmax.f32 %v274, 0.0
    %vm279 = vcmask 1045504
    %v280 = vrot.slane %v251, 2
    %v281 = vrot.slane %v252, 2
    %v282 = vsel %vm279, %v280, %v281
    %v286 = vrot.slane %v275, 2
    %v287 = vrot.slane %v276, 2
    %v288 = vsel %vm279, %v286, %v287
    %v290 = vrot.slane %v251, 4
    %v291 = vrot.slane %v252, 4
    %v292 = vsel %vm114, %v290, %v291
    %v294 = vrot.slane %v275, 4
    %v295 = vrot.slane %v276, 4
    %v296 = vsel %vm114, %v294, %v295
    %v298 = vld [vmem:[#allocation2] sm:$0xff]
    %v299 = vld [vmem:[#allocation2 + $0x8] sm:$0xff]
    %v300 = vld [vmem:[#allocation2 + $0x10] sm:$0xff]
    %v301 = vld [vmem:[#allocation2 + $0x18] sm:$0xff]
    %v302 = vld [vmem:[#allocation2 + $0x20] sm:$0xff]
    %v303 = vld [vmem:[#allocation2 + $0x28] sm:$0xff]
    %v304 = vld [vmem:[#allocation2 + $0x30] sm:$0xff]
    %v305 = vld [vmem:[#allocation2 + $0x38] sm:$0xff]
    %v306 = vld [vmem:[#allocation2 + $0x40] sm:$0xff]
    %v307 = vld [vmem:[#allocation2 + $0x48] sm:$0xff]
    %v308 = vld [vmem:[#allocation2 + $0x50] sm:$0xff]
    %v309 = vld [vmem:[#allocation2 + $0x58] sm:$0xff]
    %v310 = vld [vmem:[#allocation2 + $0x60] sm:$0xff]
    %v311 = vld [vmem:[#allocation2 + $0x68] sm:$0xff]
    %v312 = vld [vmem:[#allocation2 + $0x70] sm:$0xff]
    %v313 = vld [vmem:[#allocation2 + $0x78] sm:$0xff]
    %v314 = vld [vmem:[#allocation2 + $0x80] sm:$0xff]
    %v315 = vld [vmem:[#allocation2 + $0x88] sm:$0xff]
    %v316 = vld [vmem:[#allocation2 + $0x90] sm:$0xff]
    %v317 = vld [vmem:[#allocation2 + $0x98] sm:$0xff]
    %v318 = vld [vmem:[#allocation2 + $0xa0] sm:$0xff]
    %v319 = vld [vmem:[#allocation2 + $0xa8] sm:$0xff]
    %v320 = vld [vmem:[#allocation2 + $0xb0] sm:$0xff]
    %v321 = vld [vmem:[#allocation2 + $0xb8] sm:$0xff]
    %v322 = vld [vmem:[#allocation2 + $0xc0] sm:$0xff]
    %v323 = vld [vmem:[#allocation2 + $0xc8] sm:$0xff]
    %v324 = vld [vmem:[#allocation2 + $0xd0] sm:$0xff]
    %v325 = vld [vmem:[#allocation2 + $0xd8] sm:$0xff]
    %v326 = vld [vmem:[#allocation2 + $0xe0] sm:$0xff]
    %v327 = vld [vmem:[#allocation2 + $0xe8] sm:$0xff]
    %v328 = vld [vmem:[#allocation2 + $0xf0] sm:$0xff]
    %v329 = vld [vmem:[#allocation2 + $0xf8] sm:$0xff]
    %v330 = vld [vmem:[#allocation2 + $0x100] sm:$0xff]
    %v331 = vld [vmem:[#allocation2 + $0x108] sm:$0xff]
    %v332 = vld [vmem:[#allocation2 + $0x110] sm:$0xff]
    %v333 = vld [vmem:[#allocation2 + $0x118] sm:$0xff]
    %v334 = vld [vmem:[#allocation2 + $0x120] sm:$0xff]
    %v335 = vld [vmem:[#allocation2 + $0x128] sm:$0xff]
    %v336 = vld [vmem:[#allocation2 + $0x130] sm:$0xff]
    %v337 = vld [vmem:[#allocation2 + $0x138] sm:$0xff]
    %v338 = vld [vmem:[#allocation2 + $0x140] sm:$0xff]
    %v339 = vld [vmem:[#allocation2 + $0x148] sm:$0xff]
    %v340 = vld [vmem:[#allocation2 + $0x150] sm:$0xff]
    %v341 = vld [vmem:[#allocation2 + $0x158] sm:$0xff]
    %v342 = vld [vmem:[#allocation2 + $0x160] sm:$0xff]
    %v343 = vld [vmem:[#allocation2 + $0x168] sm:$0xff]
    %v344 = vld [vmem:[#allocation2 + $0x170] sm:$0xff]
    %v345 = vld [vmem:[#allocation2 + $0x178] sm:$0xff]
    %v346 = vld [vmem:[#allocation2 + $0x180] sm:$0xff]
    %v347 = vld [vmem:[#allocation2 + $0x188] sm:$0xff]
    %v348 = vld [vmem:[#allocation2 + $0x190] sm:$0xff]
    %v349 = vld [vmem:[#allocation2 + $0x198] sm:$0xff]
    %v350 = vld [vmem:[#allocation2 + $0x1a0] sm:$0xff]
    %v351 = vld [vmem:[#allocation2 + $0x1a8] sm:$0xff]
    %v352 = vld [vmem:[#allocation2 + $0x1b0] sm:$0xff]
    %v353 = vld [vmem:[#allocation2 + $0x1b8] sm:$0xff]
    %v354 = vld [vmem:[#allocation2 + $0x1c0] sm:$0xff]
    %v355 = vld [vmem:[#allocation2 + $0x1c8] sm:$0xff]
    %v356 = vld [vmem:[#allocation2 + $0x1d0] sm:$0xff]
    %v357 = vld [vmem:[#allocation2 + $0x1d8] sm:$0xff]
    %v358 = vld [vmem:[#allocation2 + $0x1e0] sm:$0xff]
    %v359 = vld [vmem:[#allocation2 + $0x1e8] sm:$0xff]
    %v360 = vld [vmem:[#allocation2 + $0x1f0] sm:$0xff]
    %v361 = vld [vmem:[#allocation2 + $0x1f8] sm:$0xff]
    %v362 = vld [vmem:[#allocation2 + $0x200] sm:$0xff]
    %v363 = vld [vmem:[#allocation2 + $0x208] sm:$0xff]
    %v364 = vld [vmem:[#allocation2 + $0x210] sm:$0xff]
    %v365 = vld [vmem:[#allocation2 + $0x218] sm:$0xff]
    %v366 = vld [vmem:[#allocation2 + $0x220] sm:$0xff]
    %v367 = vld [vmem:[#allocation2 + $0x228] sm:$0xff]
    %v368 = vld [vmem:[#allocation2 + $0x230] sm:$0xff]
    %v369 = vld [vmem:[#allocation2 + $0x238] sm:$0xff]
    %v370 = vld [vmem:[#allocation2 + $0x240] sm:$0xff]
    %v371 = vld [vmem:[#allocation2 + $0x248] sm:$0xff]
    %v372 = vld [vmem:[#allocation2 + $0x250] sm:$0xff]
    %v373 = vld [vmem:[#allocation2 + $0x258] sm:$0xff]
    %v374 = vld [vmem:[#allocation2 + $0x260] sm:$0xff]
    %v375 = vld [vmem:[#allocation2 + $0x268] sm:$0xff]
    %v376 = vld [vmem:[#allocation2 + $0x270] sm:$0xff]
    %v377 = vld [vmem:[#allocation2 + $0x278] sm:$0xff]
    %v378 = vld [vmem:[#allocation2 + $0x280] sm:$0xff]
    %v379 = vld [vmem:[#allocation2 + $0x288] sm:$0xff]
    %v380 = vld [vmem:[#allocation2 + $0x290] sm:$0xff]
    %v381 = vld [vmem:[#allocation2 + $0x298] sm:$0xff]
    %v382 = vld [vmem:[#allocation2 + $0x2a0] sm:$0xff]
    %v383 = vld [vmem:[#allocation2 + $0x2a8] sm:$0xff]
    %v384 = vld [vmem:[#allocation2 + $0x2b0] sm:$0xff]
    %v385 = vld [vmem:[#allocation2 + $0x2b8] sm:$0xff]
    %v386 = vld [vmem:[#allocation2 + $0x2c0] sm:$0xff]
    %v387 = vld [vmem:[#allocation2 + $0x2c8] sm:$0xff]
    %v388 = vld [vmem:[#allocation2 + $0x2d0] sm:$0xff]
    %v389 = vld [vmem:[#allocation2 + $0x2d8] sm:$0xff]
    %v390 = vld [vmem:[#allocation2 + $0x2e0] sm:$0xff]
    %v391 = vld [vmem:[#allocation2 + $0x2e8] sm:$0xff]
    %v392 = vld [vmem:[#allocation2 + $0x2f0] sm:$0xff]
    %v393 = vld [vmem:[#allocation2 + $0x2f8] sm:$0xff]
    %v394 = vld [vmem:[#allocation2 + $0x300] sm:$0xff]
    %v395 = vld [vmem:[#allocation2 + $0x308] sm:$0xff]
    %v396 = vld [vmem:[#allocation2 + $0x310] sm:$0xff]
    %v397 = vld [vmem:[#allocation2 + $0x318] sm:$0xff]
    %v398 = vld [vmem:[#allocation2 + $0x320] sm:$0xff]
    %v399 = vld [vmem:[#allocation2 + $0x328] sm:$0xff]
    %v400 = vld [vmem:[#allocation2 + $0x330] sm:$0xff]
    %v401 = vld [vmem:[#allocation2 + $0x338] sm:$0xff]
    %v402 = vld [vmem:[#allocation2 + $0x340] sm:$0xff]
    %v403 = vld [vmem:[#allocation2 + $0x348] sm:$0xff]
    %v404 = vld [vmem:[#allocation2 + $0x350] sm:$0xff]
    %v405 = vld [vmem:[#allocation2 + $0x358] sm:$0xff]
    %v406 = vld [vmem:[#allocation2 + $0x360] sm:$0xff]
    %v407 = vld [vmem:[#allocation2 + $0x368] sm:$0xff]
    %v408 = vld [vmem:[#allocation2 + $0x370] sm:$0xff]
    %v409 = vld [vmem:[#allocation2 + $0x378] sm:$0xff]
    %v410 = vld [vmem:[#allocation2 + $0x380] sm:$0xff]
    %v411 = vld [vmem:[#allocation2 + $0x388] sm:$0xff]
    %v412 = vld [vmem:[#allocation2 + $0x390] sm:$0xff]
    %v413 = vld [vmem:[#allocation2 + $0x398] sm:$0xff]
    %v414 = vld [vmem:[#allocation2 + $0x3a0] sm:$0xff]
    %v415 = vld [vmem:[#allocation2 + $0x3a8] sm:$0xff]
    %v416 = vld [vmem:[#allocation2 + $0x3b0] sm:$0xff]
    %v417 = vld [vmem:[#allocation2 + $0x3b8] sm:$0xff]
    %v418 = vld [vmem:[#allocation2 + $0x3c0] sm:$0xff]
    %v419 = vld [vmem:[#allocation2 + $0x3c8] sm:$0xff]
    %v420 = vld [vmem:[#allocation2 + $0x3d0] sm:$0xff]
    %v421 = vld [vmem:[#allocation2 + $0x3d8] sm:$0xff]
    %v422 = vld [vmem:[#allocation2 + $0x3e0] sm:$0xff]
    %v423 = vld [vmem:[#allocation2 + $0x3e8] sm:$0xff]
    %v424 = vld [vmem:[#allocation2 + $0x3f0] sm:$0xff]
    %v425 = vld [vmem:[#allocation2 + $0x3f8] sm:$0xff]
    %v426 = vld [vmem:[#allocation2 + $0x400] sm:$0xff]
    %v427 = vld [vmem:[#allocation2 + $0x408] sm:$0xff]
    %v428 = vld [vmem:[#allocation2 + $0x410] sm:$0xff]
    %v429 = vld [vmem:[#allocation2 + $0x418] sm:$0xff]
    %v430 = vld [vmem:[#allocation2 + $0x420] sm:$0xff]
    %v431 = vld [vmem:[#allocation2 + $0x428] sm:$0xff]
    %v432 = vld [vmem:[#allocation2 + $0x430] sm:$0xff]
    %v433 = vld [vmem:[#allocation2 + $0x438] sm:$0xff]
    %v434 = vld [vmem:[#allocation2 + $0x440] sm:$0xff]
    %v435 = vld [vmem:[#allocation2 + $0x448] sm:$0xff]
    %v436 = vld [vmem:[#allocation2 + $0x450] sm:$0xff]
    %v437 = vld [vmem:[#allocation2 + $0x458] sm:$0xff]
    %v438 = vld [vmem:[#allocation2 + $0x460] sm:$0xff]
    %v439 = vld [vmem:[#allocation2 + $0x468] sm:$0xff]
    %v440 = vld [vmem:[#allocation2 + $0x470] sm:$0xff]
    %v441 = vld [vmem:[#allocation2 + $0x478] sm:$0xff]
    %v442 = vld [vmem:[#allocation2 + $0x480] sm:$0xff]
    %v443 = vld [vmem:[#allocation2 + $0x488] sm:$0xff]
    %v444 = vld [vmem:[#allocation2 + $0x490] sm:$0xff]
    %v445 = vld [vmem:[#allocation2 + $0x498] sm:$0xff]
    %v446 = vld [vmem:[#allocation2 + $0x4a0] sm:$0xff]
    %v447 = vld [vmem:[#allocation2 + $0x4a8] sm:$0xff]
    %v448 = vld [vmem:[#allocation2 + $0x4b0] sm:$0xff]
    %v449 = vld [vmem:[#allocation2 + $0x4b8] sm:$0xff]
    %v450 = vld [vmem:[#allocation2 + $0x4c0] sm:$0xff]
    %v451 = vld [vmem:[#allocation2 + $0x4c8] sm:$0xff]
    %v452 = vld [vmem:[#allocation2 + $0x4d0] sm:$0xff]
    %v453 = vld [vmem:[#allocation2 + $0x4d8] sm:$0xff]
    %v454 = vld [vmem:[#allocation2 + $0x4e0] sm:$0xff]
    %v455 = vld [vmem:[#allocation2 + $0x4e8] sm:$0xff]
    %v456 = vld [vmem:[#allocation2 + $0x4f0] sm:$0xff]
    %v457 = vld [vmem:[#allocation2 + $0x4f8] sm:$0xff]
    %458 = vmatprep.subr.mxu0 %v299
    %459 = vmatpush1.msra.mxu0 %v298
    %460 = vmatprep.subr.mxu0 %v301
    %461 = vmatpush1.msra.mxu0 %v300
    %462 = vmatprep.subr.mxu0 %v303
    %463 = vmatpush1.msra.mxu0 %v302
    %464 = vmatprep.subr.mxu0 %v305
    %465 = vmatpush1.msra.mxu0 %v304
    %466 = vmatprep.subr.mxu0 %v307
    %467 = vmatpush1.msra.mxu0 %v306
    %468 = vmatprep.subr.mxu0 %v309
    %469 = vmatpush1.msra.mxu0 %v308
    %470 = vmatprep.subr.mxu0 %v311
    %471 = vmatpush1.msra.mxu0 %v310
    %472 = vmatprep.subr.mxu0 %v313
    %473 = vmatpush1.msra.mxu0 %v312
    %474 = vmatprep.subr.mxu0 %v315
    %475 = vmatpush1.msra.mxu0 %v314
    %476 = vmatprep.subr.mxu0 %v317
    %477 = vmatpush1.msra.mxu0 %v316
    %478 = vmatprep.subr.mxu0 %v319
    %479 = vmatpush1.msra.mxu0 %v318
    %480 = vmatprep.subr.mxu0 %v321
    %481 = vmatpush1.msra.mxu0 %v320
    %482 = vmatprep.subr.mxu0 %v323
    %483 = vmatpush1.msra.mxu0 %v322
    %484 = vmatprep.subr.mxu0 %v325
    %485 = vmatpush1.msra.mxu0 %v324
    %486 = vmatprep.subr.mxu0 %v327
    %487 = vmatpush1.msra.mxu0 %v326
    %488 = vmatprep.subr.mxu0 %v329
    %489 = vmatpush1.msra.mxu0 %v328
    %490 = vmatprep.subr.mxu0 %v331
    %491 = vmatpush1.msra.mxu0 %v330
    %492 = vmatprep.subr.mxu0 %v333
    %493 = vmatpush1.msra.mxu0 %v332
    %494 = vmatprep.subr.mxu0 %v335
    %495 = vmatpush1.msra.mxu0 %v334
    %496 = vmatprep.subr.mxu0 %v337
    %497 = vmatpush1.msra.mxu0 %v336
    %498 = vmatprep.subr.mxu0 %v339
    %499 = vmatpush1.msra.mxu0 %v338
    %500 = vmatprep.subr.mxu0 %v341
    %501 = vmatpush1.msra.mxu0 %v340
    %502 = vmatprep.subr.mxu0 %v343
    %503 = vmatpush1.msra.mxu0 %v342
    %504 = vmatprep.subr.mxu0 %v345
    %505 = vmatpush1.msra.mxu0 %v344
    %506 = vmatprep.subr.mxu0 %v347
    %507 = vmatpush1.msra.mxu0 %v346
    %508 = vmatprep.subr.mxu0 %v349
    %509 = vmatpush1.msra.mxu0 %v348
    %510 = vmatprep.subr.mxu0 %v351
    %511 = vmatpush1.msra.mxu0 %v350
    %512 = vmatprep.subr.mxu0 %v353
    %513 = vmatpush1.msra.mxu0 %v352
    %514 = vmatprep.subr.mxu0 %v355
    %515 = vmatpush1.msra.mxu0 %v354
    %516 = vmatprep.subr.mxu0 %v357
    %517 = vmatpush1.msra.mxu0 %v356
    %518 = vmatprep.subr.mxu0 %v359
    %519 = vmatpush1.msra.mxu0 %v358
    %520 = vmatprep.subr.mxu0 %v361
    %521 = vmatpush1.msra.mxu0 %v360
    %522 = vmatprep.mubr.f32.mxu0 %v275
    %523 = vmatmul.mubr.f32.gmra.mrb[0].mxu0 %v251
    %v524 = vpop.f32.mrb[0].mxu0
    %v525 = vadd.f32 0.0, %v524
    %v526 = vpop.f32.mrb[0].mxu0
    %v527 = vadd.f32 0.0, %v526
    %528 = vmatprep.mubr.f32.mxu0 %v282
    %529 = vmatmul.mubr.f32.gmra.mrb[0].mxu0 %v275
    %v530 = vpop.f32.mrb[0].mxu0
    %v531 = vadd.f32 0.0, %v530
    %v532 = vpop.f32.mrb[0].mxu0
    %v533 = vadd.f32 0.0, %v532
    %534 = vdwg.mxu0
    %535 = vmatprep.subr.mxu0 %v363
    %536 = vmatpush1.msra.mxu0 %v362
    %537 = vmatprep.subr.mxu0 %v365
    %538 = vmatpush1.msra.mxu0 %v364
    %539 = vmatprep.subr.mxu0 %v367
    %540 = vmatpush1.msra.mxu0 %v366
    %541 = vmatprep.subr.mxu0 %v369
    %542 = vmatpush1.msra.mxu0 %v368
    %543 = vmatprep.subr.mxu0 %v371
    %544 = vmatpush1.msra.mxu0 %v370
    %545 = vmatprep.subr.mxu0 %v373
    %546 = vmatpush1.msra.mxu0 %v372
    %547 = vmatprep.subr.mxu0 %v375
    %548 = vmatpush1.msra.mxu0 %v374
    %549 = vmatprep.subr.mxu0 %v377
    %550 = vmatpush1.msra.mxu0 %v376
    %551 = vmatprep.subr.mxu0 %v379
    %552 = vmatpush1.msra.mxu0 %v378
    %553 = vmatprep.subr.mxu0 %v381
    %554 = vmatpush1.msra.mxu0 %v380
    %555 = vmatprep.subr.mxu0 %v383
    %556 = vmatpush1.msra.mxu0 %v382
    %557 = vmatprep.subr.mxu0 %v385
    %558 = vmatpush1.msra.mxu0 %v384
    %559 = vmatprep.subr.mxu0 %v387
    %560 = vmatpush1.msra.mxu0 %v386
    %561 = vmatprep.subr.mxu0 %v389
    %562 = vmatpush1.msra.mxu0 %v388
    %563 = vmatprep.subr.mxu0 %v391
    %564 = vmatpush1.msra.mxu0 %v390
    %565 = vmatprep.subr.mxu0 %v393
    %566 = vmatpush1.msra.mxu0 %v392
    %567 = vmatprep.subr.mxu0 %v395
    %568 = vmatpush1.msra.mxu0 %v394
    %569 = vmatprep.subr.mxu0 %v397
    %570 = vmatpush1.msra.mxu0 %v396
    %571 = vmatprep.subr.mxu0 %v399
    %572 = vmatpush1.msra.mxu0 %v398
    %573 = vmatprep.subr.mxu0 %v401
    %574 = vmatpush1.msra.mxu0 %v400
    %575 = vmatprep.subr.mxu0 %v403
    %576 = vmatpush1.msra.mxu0 %v402
    %577 = vmatprep.subr.mxu0 %v405
    %578 = vmatpush1.msra.mxu0 %v404
    %579 = vmatprep.subr.mxu0 %v407
    %580 = vmatpush1.msra.mxu0 %v406
    %581 = vmatprep.subr.mxu0 %v409
    %582 = vmatpush1.msra.mxu0 %v408
    %583 = vmatprep.subr.mxu0 %v411
    %584 = vmatpush1.msra.mxu0 %v410
    %585 = vmatprep.subr.mxu0 %v413
    %586 = vmatpush1.msra.mxu0 %v412
    %587 = vmatprep.subr.mxu0 %v415
    %588 = vmatpush1.msra.mxu0 %v414
    %589 = vmatprep.subr.mxu0 %v417
    %590 = vmatpush1.msra.mxu0 %v416
    %591 = vmatprep.subr.mxu0 %v419
    %592 = vmatpush1.msra.mxu0 %v418
    %593 = vmatprep.subr.mxu0 %v421
    %594 = vmatpush1.msra.mxu0 %v420
    %595 = vmatprep.subr.mxu0 %v423
    %596 = vmatpush1.msra.mxu0 %v422
    %597 = vmatprep.subr.mxu0 %v425
    %598 = vmatpush1.msra.mxu0 %v424
    %599 = vmatprep.mubr.f32.mxu0 %v288
    %600 = vmatmul.mubr.f32.gmra.mrb[0].mxu0 %v282
    %v601 = vpop.f32.mrb[0].mxu0
    %v602 = vadd.f32 %v525, %v601
    %v603 = vpop.f32.mrb[0].mxu0
    %v604 = vadd.f32 %v527, %v603
    %605 = vmatprep.mubr.f32.mxu0 %v292
    %606 = vmatmul.mubr.f32.gmra.mrb[0].mxu0 %v288
    %v607 = vpop.f32.mrb[0].mxu0
    %v608 = vadd.f32 %v531, %v607
    %v609 = vpop.f32.mrb[0].mxu0
    %v610 = vadd.f32 %v533, %v609
    %611 = vdwg.mxu0
    %612 = vmatprep.subr.mxu0 %v427
    %613 = vmatpush1.msra.mxu0 %v426
    %614 = vmatprep.subr.mxu0 %v429
    %615 = vmatpush1.msra.mxu0 %v428
    %616 = vmatprep.subr.mxu0 %v431
    %617 = vmatpush1.msra.mxu0 %v430
    %618 = vmatprep.subr.mxu0 %v433
    %619 = vmatpush1.msra.mxu0 %v432
    %620 = vmatprep.subr.mxu0 %v435
    %621 = vmatpush1.msra.mxu0 %v434
    %622 = vmatprep.subr.mxu0 %v437
    %623 = vmatpush1.msra.mxu0 %v436
    %624 = vmatprep.subr.mxu0 %v439
    %625 = vmatpush1.msra.mxu0 %v438
    %626 = vmatprep.subr.mxu0 %v441
    %627 = vmatpush1.msra.mxu0 %v440
    %628 = vmatprep.subr.mxu0 %v443
    %629 = vmatpush1.msra.mxu0 %v442
    %630 = vmatprep.subr.mxu0 %v445
    %631 = vmatpush1.msra.mxu0 %v444
    %632 = vmatprep.subr.mxu0 %v447
    %633 = vmatpush1.msra.mxu0 %v446
    %634 = vmatprep.subr.mxu0 %v449
    %635 = vmatpush1.msra.mxu0 %v448
    %636 = vmatprep.subr.mxu0 %v451
    %637 = vmatpush1.msra.mxu0 %v450
    %638 = vmatprep.subr.mxu0 %v453
    %639 = vmatpush1.msra.mxu0 %v452
    %640 = vmatprep.subr.mxu0 %v455
    %641 = vmatpush1.msra.mxu0 %v454
    %642 = vmatprep.subr.mxu0 %v457
    %643 = vmatpush1.msra.mxu0 %v456
    %644 = vmatprep.subr.mxu0 0.0
    %645 = vmatpush1.msra.mxu0 0.0
    %646 = vmatprep.subr.mxu0 0.0
    %647 = vmatpush1.msra.mxu0 0.0
    %648 = vmatprep.subr.mxu0 0.0
    %649 = vmatpush1.msra.mxu0 0.0
    %650 = vmatprep.subr.mxu0 0.0
    %651 = vmatpush1.msra.mxu0 0.0
    %652 = vmatprep.subr.mxu0 0.0
    %653 = vmatpush1.msra.mxu0 0.0
    %654 = vmatprep.subr.mxu0 0.0
    %655 = vmatpush1.msra.mxu0 0.0
    %656 = vmatprep.subr.mxu0 0.0
    %657 = vmatpush1.msra.mxu0 0.0
    %658 = vmatprep.subr.mxu0 0.0
    %659 = vmatpush1.msra.mxu0 0.0
    %660 = vmatprep.subr.mxu0 0.0
    %661 = vmatpush1.msra.mxu0 0.0
    %662 = vmatprep.subr.mxu0 0.0
    %663 = vmatpush1.msra.mxu0 0.0
    %664 = vmatprep.subr.mxu0 0.0
    %665 = vmatpush1.msra.mxu0 0.0
    %666 = vmatprep.subr.mxu0 0.0
    %667 = vmatpush1.msra.mxu0 0.0
    %668 = vmatprep.subr.mxu0 0.0
    %669 = vmatpush1.msra.mxu0 0.0
    %670 = vmatprep.subr.mxu0 0.0
    %671 = vmatpush1.msra.mxu0 0.0
    %672 = vmatprep.subr.mxu0 0.0
    %673 = vmatpush1.msra.mxu0 0.0
    %674 = vmatprep.subr.mxu0 0.0
    %675 = vmatpush1.msra.mxu0 0.0
    %676 = vmatprep.mubr.f32.mxu0 0.0
    %677 = vmatmul.mubr.f32.gmra.mrb[0].mxu0 %v292
    %v678 = vpop.f32.mrb[0].mxu0
    %v679 = vadd.f32 %v602, %v678
    %v680 = vpop.f32.mrb[0].mxu0
    %v681 = vadd.f32 %v604, %v680
    %682 = vmatprep.mubr.f32.mxu0 0.0
    %683 = vmatmul.mubr.f32.gmra.mrb[0].mxu0 %v296
    %v684 = vpop.f32.mrb[0].mxu0
    %v685 = vadd.f32 %v608, %v684
    %v686 = vpop.f32.mrb[0].mxu0
    %v687 = vadd.f32 %v610, %v686
    %688 = vdwg.mxu0
    %v689 = vmax.f32 %v679, %v685
    %v690 = vmax.f32 %v681, %v687
    %v691 = vld [vmem:[%s4] sm:$0x1]
    %v692 = vmax.f32 %v689, %v690
    %v694 = vlaneseq
    %v695 = vshrl.u32 %v694, 7
    %v696 = vsub.s32 0, %v695
    %v697 = vrot.slane %v691, %v696
    %v699 = vadd.f32 %v692, %v697
    %v700 = vmax.f32 %v699, 0.0
    %v702 = vrot.slane %v700, 2
    %v704 = vrot.slane %v700, 4
    %v706 = vrot.slane %v700, 6
    %v708 = vld [vmem:[%s5] sm:$0xff]
    %v709 = vld [vmem:[%s5 + $0x8] sm:$0xff]
    %v710 = vld [vmem:[%s5 + $0x10] sm:$0xff]
    %v711 = vld [vmem:[%s5 + $0x18] sm:$0xff]
    %v712 = vld [vmem:[%s5 + $0x20] sm:$0xff]
    %v713 = vld [vmem:[%s5 + $0x28] sm:$0xff]
    %v714 = vld [vmem:[%s5 + $0x30] sm:$0xff]
    %v715 = vld [vmem:[%s5 + $0x38] sm:$0xff]
    %v716 = vld [vmem:[%s5 + $0x40] sm:$0xff]
    %v717 = vld [vmem:[%s5 + $0x48] sm:$0xff]
    %v718 = vld [vmem:[%s5 + $0x50] sm:$0xff]
    %v719 = vld [vmem:[%s5 + $0x58] sm:$0xff]
    %v720 = vld [vmem:[%s5 + $0x60] sm:$0xff]
    %v721 = vld [vmem:[%s5 + $0x68] sm:$0xff]
    %v722 = vld [vmem:[%s5 + $0x70] sm:$0xff]
    %v723 = vld [vmem:[%s5 + $0x78] sm:$0xff]
    %v724 = vld [vmem:[%s5 + $0x80] sm:$0xff]
    %v725 = vld [vmem:[%s5 + $0x88] sm:$0xff]
    %v726 = vld [vmem:[%s5 + $0x90] sm:$0xff]
    %v727 = vld [vmem:[%s5 + $0x98] sm:$0xff]
    %v728 = vld [vmem:[%s5 + $0xa0] sm:$0xff]
    %v729 = vld [vmem:[%s5 + $0xa8] sm:$0xff]
    %v730 = vld [vmem:[%s5 + $0xb0] sm:$0xff]
    %v731 = vld [vmem:[%s5 + $0xb8] sm:$0xff]
    %v732 = vld [vmem:[%s5 + $0xc0] sm:$0xff]
    %v733 = vld [vmem:[%s5 + $0xc8] sm:$0xff]
    %v734 = vld [vmem:[%s5 + $0xd0] sm:$0xff]
    %v735 = vld [vmem:[%s5 + $0xd8] sm:$0xff]
    %v736 = vld [vmem:[%s5 + $0xe0] sm:$0xff]
    %v737 = vld [vmem:[%s5 + $0xe8] sm:$0xff]
    %v738 = vld [vmem:[%s5 + $0xf0] sm:$0xff]
    %v739 = vld [vmem:[%s5 + $0xf8] sm:$0xff]
    %v740 = vld [vmem:[%s5 + $0x100] sm:$0xff]
    %v741 = vld [vmem:[%s5 + $0x108] sm:$0xff]
    %v742 = vld [vmem:[%s5 + $0x110] sm:$0xff]
    %v743 = vld [vmem:[%s5 + $0x118] sm:$0xff]
    %v744 = vld [vmem:[%s5 + $0x120] sm:$0xff]
    %v745 = vld [vmem:[%s5 + $0x128] sm:$0xff]
    %v746 = vld [vmem:[%s5 + $0x130] sm:$0xff]
    %v747 = vld [vmem:[%s5 + $0x138] sm:$0xff]
    %v748 = vld [vmem:[%s5 + $0x140] sm:$0xff]
    %v749 = vld [vmem:[%s5 + $0x148] sm:$0xff]
    %v750 = vld [vmem:[%s5 + $0x150] sm:$0xff]
    %v751 = vld [vmem:[%s5 + $0x158] sm:$0xff]
    %v752 = vld [vmem:[%s5 + $0x160] sm:$0xff]
    %v753 = vld [vmem:[%s5 + $0x168] sm:$0xff]
    %v754 = vld [vmem:[%s5 + $0x170] sm:$0xff]
    %v755 = vld [vmem:[%s5 + $0x178] sm:$0xff]
    %v756 = vld [vmem:[%s5 + $0x180] sm:$0xff]
    %v757 = vld [vmem:[%s5 + $0x188] sm:$0xff]
    %v758 = vld [vmem:[%s5 + $0x190] sm:$0xff]
    %v759 = vld [vmem:[%s5 + $0x198] sm:$0xff]
    %v760 = vld [vmem:[%s5 + $0x1a0] sm:$0xff]
    %v761 = vld [vmem:[%s5 + $0x1a8] sm:$0xff]
    %v762 = vld [vmem:[%s5 + $0x1b0] sm:$0xff]
    %v763 = vld [vmem:[%s5 + $0x1b8] sm:$0xff]
    %v764 = vld [vmem:[%s5 + $0x1c0] sm:$0xff]
    %v765 = vld [vmem:[%s5 + $0x1c8] sm:$0xff]
    %v766 = vld [vmem:[%s5 + $0x1d0] sm:$0xff]
    %v767 = vld [vmem:[%s5 + $0x1d8] sm:$0xff]
    %v768 = vld [vmem:[%s5 + $0x1e0] sm:$0xff]
    %v769 = vld [vmem:[%s5 + $0x1e8] sm:$0xff]
    %v770 = vld [vmem:[%s5 + $0x1f0] sm:$0xff]
    %v771 = vld [vmem:[%s5 + $0x1f8] sm:$0xff]
    %v772 = vld [vmem:[%s6] sm:$0x1]
    %v774 = vlaneseq
    %v775 = vshrl.u32 %v774, 7
    %v776 = vsub.s32 0, %v775
    %v777 = vrot.slane %v772, %v776
    %779 = vmatprep.subr.mxu0 0.0
    %780 = vmatpush1.msra.mxu0 %v708
    %781 = vmatprep.subr.mxu0 0.0
    %782 = vmatpush1.msra.mxu0 %v709
    %783 = vmatprep.subr.mxu0 0.0
    %784 = vmatpush1.msra.mxu0 %v710
    %785 = vmatprep.subr.mxu0 0.0
    %786 = vmatpush1.msra.mxu0 %v711
    %787 = vmatprep.subr.mxu0 0.0
    %788 = vmatpush1.msra.mxu0 %v712
    %789 = vmatprep.subr.mxu0 0.0
    %790 = vmatpush1.msra.mxu0 %v713
    %791 = vmatprep.subr.mxu0 0.0
    %792 = vmatpush1.msra.mxu0 %v714
    %793 = vmatprep.subr.mxu0 0.0
    %794 = vmatpush1.msra.mxu0 %v715
    %795 = vmatprep.subr.mxu0 0.0
    %796 = vmatpush1.msra.mxu0 %v716
    %797 = vmatprep.subr.mxu0 0.0
    %798 = vmatpush1.msra.mxu0 %v717
    %799 = vmatprep.subr.mxu0 0.0
    %800 = vmatpush1.msra.mxu0 %v718
    %801 = vmatprep.subr.mxu0 0.0
    %802 = vmatpush1.msra.mxu0 %v719
    %803 = vmatprep.subr.mxu0 0.0
    %804 = vmatpush1.msra.mxu0 %v720
    %805 = vmatprep.subr.mxu0 0.0
    %806 = vmatpush1.msra.mxu0 %v721
    %807 = vmatprep.subr.mxu0 0.0
    %808 = vmatpush1.msra.mxu0 %v722
    %809 = vmatprep.subr.mxu0 0.0
    %810 = vmatpush1.msra.mxu0 %v723
    %811 = vmatprep.subr.mxu0 0.0
    %812 = vmatpush1.msra.mxu0 %v724
    %813 = vmatprep.subr.mxu0 0.0
    %814 = vmatpush1.msra.mxu0 %v725
    %815 = vmatprep.subr.mxu0 0.0
    %816 = vmatpush1.msra.mxu0 %v726
    %817 = vmatprep.subr.mxu0 0.0
    %818 = vmatpush1.msra.mxu0 %v727
    %819 = vmatprep.subr.mxu0 0.0
    %820 = vmatpush1.msra.mxu0 %v728
    %821 = vmatprep.subr.mxu0 0.0
    %822 = vmatpush1.msra.mxu0 %v729
    %823 = vmatprep.subr.mxu0 0.0
    %824 = vmatpush1.msra.mxu0 %v730
    %825 = vmatprep.subr.mxu0 0.0
    %826 = vmatpush1.msra.mxu0 %v731
    %827 = vmatprep.subr.mxu0 0.0
    %828 = vmatpush1.msra.mxu0 %v732
    %829 = vmatprep.subr.mxu0 0.0
    %830 = vmatpush1.msra.mxu0 %v733
    %831 = vmatprep.subr.mxu0 0.0
    %832 = vmatpush1.msra.mxu0 %v734
    %833 = vmatprep.subr.mxu0 0.0
    %834 = vmatpush1.msra.mxu0 %v735
    %835 = vmatprep.subr.mxu0 0.0
    %836 = vmatpush1.msra.mxu0 %v736
    %837 = vmatprep.subr.mxu0 0.0
    %838 = vmatpush1.msra.mxu0 %v737
    %839 = vmatprep.subr.mxu0 0.0
    %840 = vmatpush1.msra.mxu0 %v738
    %841 = vmatprep.subr.mxu0 0.0
    %842 = vmatpush1.msra.mxu0 %v739
    %843 = vmatprep.mubr.f32.mxu0 %v702
    %844 = vmatmul.mubr.f32.gmra.mrb[0].mxu0 %v700
    %v845 = vpop.f32.mrb[0].mxu0
    %v846 = vadd.f32 %v777, %v845
    %v847 = vpop.f32.mrb[0].mxu0
    %848 = vdwg.mxu0
    %849 = vmatprep.subr.mxu0 0.0
    %850 = vmatpush1.msra.mxu0 %v740
    %851 = vmatprep.subr.mxu0 0.0
    %852 = vmatpush1.msra.mxu0 %v741
    %853 = vmatprep.subr.mxu0 0.0
    %854 = vmatpush1.msra.mxu0 %v742
    %855 = vmatprep.subr.mxu0 0.0
    %856 = vmatpush1.msra.mxu0 %v743
    %857 = vmatprep.subr.mxu0 0.0
    %858 = vmatpush1.msra.mxu0 %v744
    %859 = vmatprep.subr.mxu0 0.0
    %860 = vmatpush1.msra.mxu0 %v745
    %861 = vmatprep.subr.mxu0 0.0
    %862 = vmatpush1.msra.mxu0 %v746
    %863 = vmatprep.subr.mxu0 0.0
    %864 = vmatpush1.msra.mxu0 %v747
    %865 = vmatprep.subr.mxu0 0.0
    %866 = vmatpush1.msra.mxu0 %v748
    %867 = vmatprep.subr.mxu0 0.0
    %868 = vmatpush1.msra.mxu0 %v749
    %869 = vmatprep.subr.mxu0 0.0
    %870 = vmatpush1.msra.mxu0 %v750
    %871 = vmatprep.subr.mxu0 0.0
    %872 = vmatpush1.msra.mxu0 %v751
    %873 = vmatprep.subr.mxu0 0.0
    %874 = vmatpush1.msra.mxu0 %v752
    %875 = vmatprep.subr.mxu0 0.0
    %876 = vmatpush1.msra.mxu0 %v753
    %877 = vmatprep.subr.mxu0 0.0
    %878 = vmatpush1.msra.mxu0 %v754
    %879 = vmatprep.subr.mxu0 0.0
    %880 = vmatpush1.msra.mxu0 %v755
    %881 = vmatprep.subr.mxu0 0.0
    %882 = vmatpush1.msra.mxu0 %v756
    %883 = vmatprep.subr.mxu0 0.0
    %884 = vmatpush1.msra.mxu0 %v757
    %885 = vmatprep.subr.mxu0 0.0
    %886 = vmatpush1.msra.mxu0 %v758
    %887 = vmatprep.subr.mxu0 0.0
    %888 = vmatpush1.msra.mxu0 %v759
    %889 = vmatprep.subr.mxu0 0.0
    %890 = vmatpush1.msra.mxu0 %v760
    %891 = vmatprep.subr.mxu0 0.0
    %892 = vmatpush1.msra.mxu0 %v761
    %893 = vmatprep.subr.mxu0 0.0
    %894 = vmatpush1.msra.mxu0 %v762
    %895 = vmatprep.subr.mxu0 0.0
    %896 = vmatpush1.msra.mxu0 %v763
    %897 = vmatprep.subr.mxu0 0.0
    %898 = vmatpush1.msra.mxu0 %v764
    %899 = vmatprep.subr.mxu0 0.0
    %900 = vmatpush1.msra.mxu0 %v765
    %901 = vmatprep.subr.mxu0 0.0
    %902 = vmatpush1.msra.mxu0 %v766
    %903 = vmatprep.subr.mxu0 0.0
    %904 = vmatpush1.msra.mxu0 %v767
    %905 = vmatprep.subr.mxu0 0.0
    %906 = vmatpush1.msra.mxu0 %v768
    %907 = vmatprep.subr.mxu0 0.0
    %908 = vmatpush1.msra.mxu0 %v769
    %909 = vmatprep.subr.mxu0 0.0
    %910 = vmatpush1.msra.mxu0 %v770
    %911 = vmatprep.subr.mxu0 0.0
    %912 = vmatpush1.msra.mxu0 %v771
    %913 = vmatprep.mubr.f32.mxu0 %v706
    %914 = vmatmul.mubr.f32.gmra.mrb[0].mxu0 %v704
    %v915 = vpop.f32.mrb[0].mxu0
    %v916 = vadd.f32 %v846, %v915
    %v917 = vpop.f32.mrb[0].mxu0
    %918 = vdwg.mxu0
    %v919 = vmax.f32 %v916, 0.0
    %v920 = vld [vmem:[%s7] sm:$0xff]
    %v921 = vld [vmem:[%s7 + $0x8] sm:$0xff]
    %v922 = vld [vmem:[%s7 + $0x10] sm:$0xff]
    %v923 = vld [vmem:[%s7 + $0x18] sm:$0xff]
    %v924 = vld [vmem:[%s7 + $0x20] sm:$0xff]
    %v925 = vld [vmem:[%s7 + $0x28] sm:$0xff]
    %v926 = vld [vmem:[%s7 + $0x30] sm:$0x3]
    %v927 = vld [vmem:[%s8] sm:$0x1]
    %v929 = vlaneseq
    %v930 = vshrl.u32 %v929, 7
    %v931 = vsub.s32 0, %v930
    %v932 = vrot.slane %v927, %v931
    %vm934 = vcmask 408576
    %v936 = vsel %vm934, %v919, 0
    %vm938 = vcmask 1041408
    %v940 = vsel %vm938, %v926, 0
    %942 = vmatprep.subr.mxu0 0.0
    %943 = vmatpush1.msra.mxu0 %v920
    %944 = vmatprep.subr.mxu0 0.0
    %945 = vmatpush1.msra.mxu0 %v921
    %946 = vmatprep.subr.mxu0 0.0
    %947 = vmatpush1.msra.mxu0 %v922
    %948 = vmatprep.subr.mxu0 0.0
    %949 = vmatpush1.msra.mxu0 %v923
    %950 = vmatprep.subr.mxu0 0.0
    %951 = vmatpush1.msra.mxu0 %v924
    %952 = vmatprep.subr.mxu0 0.0
    %953 = vmatpush1.msra.mxu0 %v925
    %954 = vmatprep.subr.mxu0 0.0
    %955 = vmatpush1.msra.mxu0 %v940
    %956 = vmatprep.subr.mxu0 0.0
    %957 = vmatpush1.msra.mxu0 0.0
    %958 = vmatprep.subr.mxu0 0.0
    %959 = vmatpush1.msra.mxu0 0.0
    %960 = vmatprep.subr.mxu0 0.0
    %961 = vmatpush1.msra.mxu0 0.0
    %962 = vmatprep.subr.mxu0 0.0
    %963 = vmatpush1.msra.mxu0 0.0
    %964 = vmatprep.subr.mxu0 0.0
    %965 = vmatpush1.msra.mxu0 0.0
    %966 = vmatprep.subr.mxu0 0.0
    %967 = vmatpush1.msra.mxu0 0.0
    %968 = vmatprep.subr.mxu0 0.0
    %969 = vmatpush1.msra.mxu0 0.0
    %970 = vmatprep.subr.mxu0 0.0
    %971 = vmatpush1.msra.mxu0 0.0
    %972 = vmatprep.subr.mxu0 0.0
    %973 = vmatpush1.msra.mxu0 0.0
    %974 = vmatprep.subr.mxu0 0.0
    %975 = vmatpush1.msra.mxu0 0.0
    %976 = vmatprep.subr.mxu0 0.0
    %977 = vmatpush1.msra.mxu0 0.0
    %978 = vmatprep.subr.mxu0 0.0
    %979 = vmatpush1.msra.mxu0 0.0
    %980 = vmatprep.subr.mxu0 0.0
    %981 = vmatpush1.msra.mxu0 0.0
    %982 = vmatprep.subr.mxu0 0.0
    %983 = vmatpush1.msra.mxu0 0.0
    %984 = vmatprep.subr.mxu0 0.0
    %985 = vmatpush1.msra.mxu0 0.0
    %986 = vmatprep.subr.mxu0 0.0
    %987 = vmatpush1.msra.mxu0 0.0
    %988 = vmatprep.subr.mxu0 0.0
    %989 = vmatpush1.msra.mxu0 0.0
    %990 = vmatprep.subr.mxu0 0.0
    %991 = vmatpush1.msra.mxu0 0.0
    %992 = vmatprep.subr.mxu0 0.0
    %993 = vmatpush1.msra.mxu0 0.0
    %994 = vmatprep.subr.mxu0 0.0
    %995 = vmatpush1.msra.mxu0 0.0
    %996 = vmatprep.subr.mxu0 0.0
    %997 = vmatpush1.msra.mxu0 0.0
    %998 = vmatprep.subr.mxu0 0.0
    %999 = vmatpush1.msra.mxu0 0.0
    %1000 = vmatprep.subr.mxu0 0.0
    %1001 = vmatpush1.msra.mxu0 0.0
    %1002 = vmatprep.subr.mxu0 0.0
    %1003 = vmatpush1.msra.mxu0 0.0
    %1004 = vmatprep.subr.mxu0 0.0
    %1005 = vmatpush1.msra.mxu0 0.0
    %1006 = vmatprep.mubr.f32.mxu0 0.0
    %1007 = vmatmul.mubr.f32.gmra.mrb[0].mxu0 %v936
    %v1008 = vpop.f32.mrb[0].mxu0
    %v1009 = vadd.f32 %v932, %v1008
    %v1010 = vpop.f32.mrb[0].mxu0
    %1011 = vdwg.mxu0
    %vm1012 = vcmask 74752
    %v1013 = vsel %vm1012, %v1009, -inf
    %1014 = vmax.xlane.f32.xlu0 %v1013
    %v1015 = vpop.xlane.xlu0 %1014
    %v1016 = vsub.f32 %v1009, %v1015
    %v1017 = vmul.f32 %v1016, 1.442695
    %v1018 = vpow.pop %v1017
    %v1019 = vsel %vm1012, %v1018, 0.0
    %1020 = vadd.xlane.f32.xlu0 %v1019
    %v1021 = vpop.xlane.xlu0 %1020
    %v1022 = vlog2.pop %v1021
    %v1023 = vmul.f32 %v1022, 0.6931472
    %v1024 = vsub.f32 %v1016, %v1023
    %1025 = vst.msk [vmem:[#allocation5] sm:$0x3] %vm1012, %v1024
    // Predicated region
    $region42: #{forward.1} parent=1 // pred_check
      _
    $region43: #{forward.1} parent=1 // pred_check_branch
      %1027 = sbr.rel (0) target = $region45
    $region44: #{forward.1} parent=1 // pred_region
      %s1029 = ssub.s32 32, 32
      %1030 = vsyncadd [#allocation4], %s1029
      %s1032 = sshll.u32 [#allocation5], 4
      %s1033 = int_to_ptr.vmem [resolvable:$true] %s1032
      %1035 = dma.vmem_to_hbm [thread:$0]  %s1033, 32, %s9, [#allocation4]
    $region45: #{forward.1} parent=1 // pred_fallthru
      _
    // Predicated region
    $region46: #{forward.1} parent=1 // pred_check
      _
    $region47: #{forward.1} parent=1 // pred_check_branch
      %1037 = sbr.rel (0) target = $region49
    $region48: #{forward.1} parent=1 // pred_region
      %1038 = dma.done [#allocation4], 32
    $region49: #{forward.1} parent=1 // pred_fallthru
      _
    %1039 = vsyncpa [#allocation3], 1
    %1040 = vsyncpa [#allocation4], 1

</llo_original>
